<compile_context>
chip_gen: v5e
topology: v5e:2x2
jax: 0.10.0
libtpu: 0.0.40
codegen_flags: <defaults>
</compile_context>

<pallas_src>
import functools

import jax
import jax.numpy as jnp
from jax.experimental import pallas as pl
from jax.experimental.pallas import tpu as pltpu

M = 100        # logical hidden width (PyTorch module)
MP = 128       # padded hidden width (lane-exact)
IN_F = 2       # fc1 input features
OUT_F = 2      # fc2 output features (logical)
OUT_P = 128    # padded output width (lane-dense stores)


def _round_up(n, m):
    return ((n + m - 1) // m) * m


def mlp_kernel(x_ref, w1_ref, b1_ref, w1b_ref, b1b_ref, w2_ref, b2_ref, o_ref):
    x = x_ref[...]                                   # (TB, 2)

    # Layer 1 (K=2): two VPU broadcast-FMAs instead of an MXU pass.
    h = (x[:, 0:1] * w1_ref[0:1, :]
         + x[:, 1:2] * w1_ref[1:2, :]
         + b1_ref[...])                              # (TB, 128)
    h = jnp.maximum(h, 0.0)                          # ReLU on VPU

    # Layer 2: MXU-native 128x128 matmul, f32 accumulate.
    h = jnp.dot(h, w1b_ref[...], preferred_element_type=jnp.float32) + b1b_ref[...]
    h = jnp.maximum(h, 0.0)

    # Layer 3: (128 -> 128-padded) matmul; only columns [:, :2] are real,
    # but the store is lane-dense (unmasked vst).
    y = jnp.dot(h, w2_ref[...], preferred_element_type=jnp.float32) + b2_ref[...]
    o_ref[...] = y.astype(o_ref.dtype)


@functools.partial(jax.jit, static_argnames=("tb",))
def mlp_forward(x, padded_params, *, tb=512):
    """x: (B, 2) float32. padded_params: dict of zero-padded (in,out) weights."""
    B = x.shape[0]
    TB = min(tb, _round_up(B, 8))          # batch tile (multiple of 8 sublanes)
    Bp = _round_up(B, TB)
    if Bp != B:
        x = jnp.pad(x, ((0, Bp - B), (0, 0)))
    grid = (Bp // TB,)

    p = padded_params
    weight_bytes = sum(int(v.size) * 4 for v in p.values())
    cost = pl.CostEstimate(
        flops=2 * Bp * (IN_F * MP + MP * MP + MP * OUT_P),
        transcendentals=0,
        bytes_accessed=Bp * IN_F * 4 + Bp * OUT_P * 4 + weight_bytes,
    )

    resident = lambda shape: pl.BlockSpec(shape, lambda i: (0, 0))

    out_padded = pl.pallas_call(
        mlp_kernel,
        out_shape=jax.ShapeDtypeStruct((Bp, OUT_P), jnp.float32),
        grid=grid,
        in_specs=[
            pl.BlockSpec((TB, IN_F), lambda i: (i, 0)),   # x: batch-tiled
            resident((IN_F, MP)),                         # w1   (2, 128)
            resident((1, MP)),                            # b1
            resident((MP, MP)),                           # w1b  (128, 128)
            resident((1, MP)),                            # b1b
            resident((MP, OUT_P)),                        # w2   (128, 128)
            resident((1, OUT_P)),                         # b2
        ],
        out_specs=pl.BlockSpec((TB, OUT_P), lambda i: (i, 0)),
        compiler_params=pltpu.CompilerParams(
            dimension_semantics=("parallel",)),
        cost_estimate=cost,
    )(x, p["w1"], p["b1"], p["w1b"], p["b1b"], p["w2"], p["b2"])

    return out_padded[:B, :OUT_F]


def init_params(key):
    """Deterministic init mimicking torch.nn.Linear's U(-1/sqrt(fan_in), ...).
    Weights stored already transposed to (in, out); biases as (1, out)."""
    def linear(key, fan_in, fan_out):
        kw, kb = jax.random.split(key)
        bound = 1.0 / jnp.sqrt(fan_in)
        w = jax.random.uniform(kw, (fan_in, fan_out), jnp.float32, -bound, bound)
        b = jax.random.uniform(kb, (1, fan_out), jnp.float32, -bound, bound)
        return w, b

    k1, k2, k3 = jax.random.split(key, 3)
    w1, b1 = linear(k1, IN_F, M)
    w1b, b1b = linear(k2, M, M)
    w2, b2 = linear(k3, M, OUT_F)
    return {"w1": w1, "b1": b1, "w1b": w1b, "b1b": b1b, "w2": w2, "b2": b2}


def pad_params(p):
    """Zero-pad hidden width 100->128 and output width 2->128.
    Zero pads keep the real outputs bit-identical after slicing."""
    dh = MP - M
    do = OUT_P - OUT_F
    return {
        "w1":  jnp.pad(p["w1"],  ((0, 0),  (0, dh))),
        "b1":  jnp.pad(p["b1"],  ((0, 0),  (0, dh))),
        "w1b": jnp.pad(p["w1b"], ((0, dh), (0, dh))),
        "b1b": jnp.pad(p["b1b"], ((0, 0),  (0, dh))),
        "w2":  jnp.pad(p["w2"],  ((0, dh), (0, do))),
        "b2":  jnp.pad(p["b2"],  ((0, 0),  (0, do))),
    }


def mlp_reference(x, p):
    h = jnp.maximum(x @ p["w1"] + p["b1"], 0.0)
    h = jnp.maximum(h @ p["w1b"] + p["b1b"], 0.0)
    return h @ p["w2"] + p["b2"]


if __name__ == "__main__":
    key = jax.random.PRNGKey(0)
    kx, kp = jax.random.split(key)
    B = 8
    x = jax.random.normal(kx, (B, IN_F), jnp.float32)

    params = init_params(kp)          # logical (unpadded) params for the reference
    padded = pad_params(params)       # padded params for the kernel (pad once)

    out = mlp_forward(x, padded)
    out = jax.block_until_ready(out)

    ref = mlp_reference(x, params)
    assert out.shape == (B, OUT_F), out.shape
    assert jnp.allclose(out, ref, atol=2e-4, rtol=2e-4), "mismatch vs reference"
    print("KERNEL_OK")
</pallas_src>

<mosaic_0001>
module attributes {stable_mosaic.version = 11 : i64} {
  func.func @mlp_kernel(%arg0: i32, %arg1: memref<8x2xf32, #tpu.memory_space<vmem>>, %arg2: memref<2x128xf32, #tpu.memory_space<vmem>>, %arg3: memref<1x128xf32, #tpu.memory_space<vmem>>, %arg4: memref<128x128xf32, #tpu.memory_space<vmem>>, %arg5: memref<1x128xf32, #tpu.memory_space<vmem>>, %arg6: memref<128x128xf32, #tpu.memory_space<vmem>>, %arg7: memref<1x128xf32, #tpu.memory_space<vmem>>, %arg8: memref<8x128xf32, #tpu.memory_space<vmem>>) attributes {dimension_semantics = [#tpu.dimension_semantics<parallel>], iteration_bounds = array<i64: 1>, scalar_prefetch = 0 : i64, scratch_operands = 0 : i64, tpu.core_type = #tpu.core_type<tc>, window_params = [{transform_indices = @transform_0, window_bounds = array<i64: 8, 2>}, {pipeline_mode = #tpu.pipeline_mode<synchronous>, transform_indices = @transform_1, window_bounds = array<i64: 2, 128>}, {pipeline_mode = #tpu.pipeline_mode<synchronous>, transform_indices = @transform_2, window_bounds = array<i64: 1, 128>}, {pipeline_mode = #tpu.pipeline_mode<synchronous>, transform_indices = @transform_3, window_bounds = array<i64: 128, 128>}, {pipeline_mode = #tpu.pipeline_mode<synchronous>, transform_indices = @transform_4, window_bounds = array<i64: 1, 128>}, {pipeline_mode = #tpu.pipeline_mode<synchronous>, transform_indices = @transform_5, window_bounds = array<i64: 128, 128>}, {pipeline_mode = #tpu.pipeline_mode<synchronous>, transform_indices = @transform_6, window_bounds = array<i64: 1, 128>}, {transform_indices = @transform_7, window_bounds = array<i64: 8, 128>}]} {
    %c0 = arith.constant 0 : index
    %c0_0 = arith.constant 0 : index
    %0 = vector.load %arg1[%c0, %c0_0] : memref<8x2xf32, #tpu.memory_space<vmem>>, vector<8x2xf32>
    %1 = vector.extract_strided_slice %0 {offsets = [0, 0], sizes = [8, 1], strides = [1, 1]} : vector<8x2xf32> to vector<8x1xf32>
    %c0_1 = arith.constant 0 : index
    %c0_2 = arith.constant 0 : index
    %2 = vector.load %arg2[%c0_1, %c0_2] : memref<2x128xf32, #tpu.memory_space<vmem>>, vector<1x128xf32>
    %3 = vector.broadcast %1 : vector<8x1xf32> to vector<8x128xf32>
    %4 = vector.broadcast %2 : vector<1x128xf32> to vector<8x128xf32>
    %5 = arith.mulf %3, %4 : vector<8x128xf32>
    %6 = vector.extract_strided_slice %0 {offsets = [0, 1], sizes = [8, 1], strides = [1, 1]} : vector<8x2xf32> to vector<8x1xf32>
    %c1 = arith.constant 1 : index
    %c0_3 = arith.constant 0 : index
    %7 = vector.load %arg2[%c1, %c0_3] : memref<2x128xf32, #tpu.memory_space<vmem>>, vector<1x128xf32>
    %8 = vector.broadcast %6 : vector<8x1xf32> to vector<8x128xf32>
    %9 = vector.broadcast %7 : vector<1x128xf32> to vector<8x128xf32>
    %10 = arith.mulf %8, %9 : vector<8x128xf32>
    %11 = arith.addf %5, %10 : vector<8x128xf32>
    %c0_4 = arith.constant 0 : index
    %c0_5 = arith.constant 0 : index
    %12 = vector.load %arg3[%c0_4, %c0_5] : memref<1x128xf32, #tpu.memory_space<vmem>>, vector<1x128xf32>
    %13 = vector.broadcast %12 : vector<1x128xf32> to vector<8x128xf32>
    %14 = arith.addf %11, %13 : vector<8x128xf32>
    %cst = arith.constant 0.000000e+00 : f32
    %15 = vector.broadcast %cst : f32 to vector<8x128xf32>
    %16 = arith.maximumf %14, %15 : vector<8x128xf32>
    %c0_6 = arith.constant 0 : index
    %c0_7 = arith.constant 0 : index
    %17 = vector.load %arg4[%c0_6, %c0_7] : memref<128x128xf32, #tpu.memory_space<vmem>>, vector<128x128xf32>
    %cst_8 = arith.constant dense<0.000000e+00> : vector<8x128xf32>
    %18 = tpu.matmul %16, %17, %cst_8 {dimension_numbers = #tpu.dot_dimension_numbers<[1], [0], [0], [1], [0, 0, 1, 1], [], []>} : vector<8x128xf32>, vector<128x128xf32>, vector<8x128xf32> -> vector<8x128xf32>
    %c0_9 = arith.constant 0 : index
    %c0_10 = arith.constant 0 : index
    %19 = vector.load %arg5[%c0_9, %c0_10] : memref<1x128xf32, #tpu.memory_space<vmem>>, vector<1x128xf32>
    %20 = vector.broadcast %19 : vector<1x128xf32> to vector<8x128xf32>
    %21 = arith.addf %18, %20 : vector<8x128xf32>
    %cst_11 = arith.constant 0.000000e+00 : f32
    %22 = vector.broadcast %cst_11 : f32 to vector<8x128xf32>
    %23 = arith.maximumf %21, %22 : vector<8x128xf32>
    %c0_12 = arith.constant 0 : index
    %c0_13 = arith.constant 0 : index
    %24 = vector.load %arg6[%c0_12, %c0_13] : memref<128x128xf32, #tpu.memory_space<vmem>>, vector<128x128xf32>
    %cst_14 = arith.constant dense<0.000000e+00> : vector<8x128xf32>
    %25 = tpu.matmul %23, %24, %cst_14 {dimension_numbers = #tpu.dot_dimension_numbers<[1], [0], [0], [1], [0, 0, 1, 1], [], []>} : vector<8x128xf32>, vector<128x128xf32>, vector<8x128xf32> -> vector<8x128xf32>
    %c0_15 = arith.constant 0 : index
    %c0_16 = arith.constant 0 : index
    %26 = vector.load %arg7[%c0_15, %c0_16] : memref<1x128xf32, #tpu.memory_space<vmem>>, vector<1x128xf32>
    %27 = vector.broadcast %26 : vector<1x128xf32> to vector<8x128xf32>
    %28 = arith.addf %25, %27 : vector<8x128xf32>
    %c0_17 = arith.constant 0 : index
    %c0_18 = arith.constant 0 : index
    %29 = vector.load %arg8[%c0_17, %c0_18] : memref<8x128xf32, #tpu.memory_space<vmem>>, vector<8x128xf32>
    tpu.vector_store %arg8[%c0_17, %c0_18], %28 {strides = array<i32>} : memref<8x128xf32, #tpu.memory_space<vmem>>, vector<8x128xf32>,
    return
  }
  func.func @transform_0(%arg0: i32) -> (i32, i32) {
    %c0_i32 = arith.constant 0 : i32
    %c0_i32_0 = arith.constant 0 : i32
    return %arg0, %c0_i32 : i32, i32
  }
  func.func @transform_1(%arg0: i32) -> (i32, i32) {
    %c0_i32 = arith.constant 0 : i32
    %c0_i32_0 = arith.constant 0 : i32
    %c0_i32_1 = arith.constant 0 : i32
    return %c0_i32, %c0_i32_0 : i32, i32
  }
  func.func @transform_2(%arg0: i32) -> (i32, i32) {
    %c0_i32 = arith.constant 0 : i32
    %c0_i32_0 = arith.constant 0 : i32
    %c0_i32_1 = arith.constant 0 : i32
    return %c0_i32, %c0_i32_0 : i32, i32
  }
  func.func @transform_3(%arg0: i32) -> (i32, i32) {
    %c0_i32 = arith.constant 0 : i32
    %c0_i32_0 = arith.constant 0 : i32
    %c0_i32_1 = arith.constant 0 : i32
    return %c0_i32, %c0_i32_0 : i32, i32
  }
  func.func @transform_4(%arg0: i32) -> (i32, i32) {
    %c0_i32 = arith.constant 0 : i32
    %c0_i32_0 = arith.constant 0 : i32
    %c0_i32_1 = arith.constant 0 : i32
    return %c0_i32, %c0_i32_0 : i32, i32
  }
  func.func @transform_5(%arg0: i32) -> (i32, i32) {
    %c0_i32 = arith.constant 0 : i32
    %c0_i32_0 = arith.constant 0 : i32
    %c0_i32_1 = arith.constant 0 : i32
    return %c0_i32, %c0_i32_0 : i32, i32
  }
  func.func @transform_6(%arg0: i32) -> (i32, i32) {
    %c0_i32 = arith.constant 0 : i32
    %c0_i32_0 = arith.constant 0 : i32
    %c0_i32_1 = arith.constant 0 : i32
    return %c0_i32, %c0_i32_0 : i32, i32
  }
  func.func @transform_7(%arg0: i32) -> (i32, i32) {
    %c0_i32 = arith.constant 0 : i32
    %c0_i32_0 = arith.constant 0 : i32
    return %arg0, %c0_i32 : i32, i32
  }
}

</mosaic_0001>

<llo_original>
// kernel: mlp_forward.1
$region0: #{mlp_forward.1}
  #allocation0 [shape = 'u32[]', space=smem, size = 0x4, offset = 0x4, fixed_abs, tag = 'smem constant byte address 0x4 - core index']
  #allocation1 [shape = 'u32[72,128]{1,0:T(1,128)}', space=vmem, size = 0x9000, scoped, tag = 'internal scratch']
  %s0 = inlined_call_operand.vmem [shape: f32[8,2], index: 0, kind: input, shape index: {}]
  %s1 = inlined_call_operand.vmem [shape: f32[2,128], index: 1, kind: input, shape index: {}]
  %s2 = inlined_call_operand.vmem [shape: f32[1,128], index: 2, kind: input, shape index: {}]
  %s3 = inlined_call_operand.hbm [shape: f32[128,128], index: 3, kind: input, shape index: {}]
  %s4 = inlined_call_operand.vmem [shape: f32[1,128], index: 4, kind: input, shape index: {}]
  %s5 = inlined_call_operand.hbm [shape: f32[128,128], index: 5, kind: input, shape index: {}]
  %s6 = inlined_call_operand.vmem [shape: f32[1,128], index: 6, kind: input, shape index: {}]
  %s7 = inlined_call_operand.vmem [shape: f32[8,128], index: 7, kind: output, shape index: {}]
  %s8 = sld [smem:[#allocation0]]
  $region46: #{mlp_forward.1} parent=0
    _
  %s10 = ssub.s32 1, %s8
  %s11 = scalar_select 0, %s10, %s8
  $region1: #{mlp_forward.1} parent=0
    #allocation2 [shape = 'u8[65536]{0}', space=vmem, size = 0x10000, scoped, tag = 'input window, operand 3, single buffered']
    #allocation3 [shape = 's32[1]{0}', space=sflag, size = 0x4, scoped, tag = 'scoped memory for mlp_forward.1']
    #allocation4 [shape = 'u8[65536]{0}', space=vmem, size = 0x10000, scoped, tag = 'input window, operand 5, single buffered']
    #allocation5 [shape = 's32[1]{0}', space=sflag, size = 0x4, scoped, tag = 'scoped memory for mlp_forward.1']
    %12 = vsyncpa [#allocation3], 0
    %13 = vsyncpa [#allocation5], 0
    // Predicated region
    $region2: #{mlp_forward.1} parent=1 // pred_check
      _
    $region3: #{mlp_forward.1} parent=1 // pred_check_branch
      %15 = sbr.rel (0) target = $region5
    $region4: #{mlp_forward.1} parent=1 // pred_region
      _
    $region5: #{mlp_forward.1} parent=1 // pred_fallthru
      _
    // Predicated region
    $region6: #{mlp_forward.1} parent=1 // pred_check
      _
    $region7: #{mlp_forward.1} parent=1 // pred_check_branch
      %17 = sbr.rel (0) target = $region9
    $region8: #{mlp_forward.1} parent=1 // pred_region
      _
    $region9: #{mlp_forward.1} parent=1 // pred_fallthru
      _
    // Predicated region
    $region10: #{mlp_forward.1} parent=1 // pred_check
      _
    $region11: #{mlp_forward.1} parent=1 // pred_check_branch
      %19 = sbr.rel (0) target = $region13
    $region12: #{mlp_forward.1} parent=1 // pred_region
      _
    $region13: #{mlp_forward.1} parent=1 // pred_fallthru
      _
    // Predicated region
    $region14: #{mlp_forward.1} parent=1 // pred_check
      _
    $region15: #{mlp_forward.1} parent=1 // pred_check_branch
      %21 = sbr.rel (0) target = $region17
    $region16: #{mlp_forward.1} parent=1 // pred_region
      %23 = vsyncadd [#allocation3], 0
      %s24 = sshll.u32 %s3, 4
      %s25 = int_to_ptr.hbm [resolvable:$true] %s24
      %s26 = sshll.u32 [#allocation2], 4
      %s27 = int_to_ptr.vmem [resolvable:$true] %s26
      %32 = dma.hbm_to_vmem [thread:$0]  %s25, 2048, %s27, [#allocation3], 128, 128, 8
    $region17: #{mlp_forward.1} parent=1 // pred_fallthru
      _
    // Predicated region
    $region18: #{mlp_forward.1} parent=1 // pred_check
      _
    $region19: #{mlp_forward.1} parent=1 // pred_check_branch
      %34 = sbr.rel (0) target = $region21
    $region20: #{mlp_forward.1} parent=1 // pred_region
      _
    $region21: #{mlp_forward.1} parent=1 // pred_fallthru
      _
    // Predicated region
    $region22: #{mlp_forward.1} parent=1 // pred_check
      _
    $region23: #{mlp_forward.1} parent=1 // pred_check_branch
      %36 = sbr.rel (0) target = $region25
    $region24: #{mlp_forward.1} parent=1 // pred_region
      %38 = vsyncadd [#allocation5], 0
      %s39 = sshll.u32 %s5, 4
      %s40 = int_to_ptr.hbm [resolvable:$true] %s39
      %s41 = sshll.u32 [#allocation4], 4
      %s42 = int_to_ptr.vmem [resolvable:$true] %s41
      %47 = dma.hbm_to_vmem [thread:$0]  %s40, 2048, %s42, [#allocation5], 128, 128, 8
    $region25: #{mlp_forward.1} parent=1 // pred_fallthru
      _
    // Predicated region
    $region26: #{mlp_forward.1} parent=1 // pred_check
      _
    $region27: #{mlp_forward.1} parent=1 // pred_check_branch
      %49 = sbr.rel (0) target = $region29
    $region28: #{mlp_forward.1} parent=1 // pred_region
      _
    $region29: #{mlp_forward.1} parent=1 // pred_fallthru
      _
    // Predicated region
    $region30: #{mlp_forward.1} parent=1 // pred_check
      _
    $region31: #{mlp_forward.1} parent=1 // pred_check_branch
      %51 = sbr.rel (0) target = $region33
    $region32: #{mlp_forward.1} parent=1 // pred_region
      %53 = dma.done [#allocation3], 2048
    $region33: #{mlp_forward.1} parent=1 // pred_fallthru
      _
    // Predicated region
    $region34: #{mlp_forward.1} parent=1 // pred_check
      _
    $region35: #{mlp_forward.1} parent=1 // pred_check_branch
      %55 = sbr.rel (0) target = $region37
    $region36: #{mlp_forward.1} parent=1 // pred_region
      %57 = dma.done [#allocation5], 2048
    $region37: #{mlp_forward.1} parent=1 // pred_fallthru
      _
    %v58 = vld [vmem:[%s0] sm:$0xff]
    %v59 = vld [vmem:[%s1] sm:$0x1]
    %61 = vset.pattern.permute.xlu0 0
    %62 = vperm.xlu0 %61, %v58
    %v63 = vpop.permute.xlu0 %62
    %v65 = vperm.slane %v59, 0
    %v66 = vmul.f32 %v63, %v65
    %v67 = vld [vmem:[%s1 + $0x1] sm:$0x1]
    %68 = vset.pattern.permute.xlu0 1
    %69 = vperm.xlu0 %68, %v58
    %v70 = vpop.permute.xlu0 %69
    %v72 = vperm.slane %v67, 0
    %v73 = vmul.f32 %v70, %v72
    %v74 = vadd.f32 %v66, %v73
    %v75 = vld [vmem:[%s2] sm:$0x1]
    %v77 = vperm.slane %v75, 0
    %v79 = vadd.f32 %v74, %v77
    %v80 = vmax.f32 %v79, 0.0
    %v81 = vld [vmem:[#allocation2] sm:$0xff]
    %v82 = vld [vmem:[#allocation2 + $0x8] sm:$0xff]
    %v83 = vld [vmem:[#allocation2 + $0x10] sm:$0xff]
    %v84 = vld [vmem:[#allocation2 + $0x18] sm:$0xff]
    %v85 = vld [vmem:[#allocation2 + $0x20] sm:$0xff]
    %v86 = vld [vmem:[#allocation2 + $0x28] sm:$0xff]
    %v87 = vld [vmem:[#allocation2 + $0x30] sm:$0xff]
    %v88 = vld [vmem:[#allocation2 + $0x38] sm:$0xff]
    %v89 = vld [vmem:[#allocation2 + $0x40] sm:$0xff]
    %v90 = vld [vmem:[#allocation2 + $0x48] sm:$0xff]
    %v91 = vld [vmem:[#allocation2 + $0x50] sm:$0xff]
    %v92 = vld [vmem:[#allocation2 + $0x58] sm:$0xff]
    %v93 = vld [vmem:[#allocation2 + $0x60] sm:$0xff]
    %v94 = vld [vmem:[#allocation2 + $0x68] sm:$0xff]
    %v95 = vld [vmem:[#allocation2 + $0x70] sm:$0xff]
    %v96 = vld [vmem:[#allocation2 + $0x78] sm:$0xff]
    %v97 = vld [vmem:[%s4] sm:$0x1]
    %v99 = vperm.slane %v97, 0
    %101 = vmatpush.msra.mxu0 %v96
    %102 = vmatpush.msra.mxu0 %v95
    %103 = vmatpush.msra.mxu0 %v94
    %104 = vmatpush.msra.mxu0 %v93
    %105 = vmatpush.msra.mxu0 %v92
    %106 = vmatpush.msra.mxu0 %v91
    %107 = vmatpush.msra.mxu0 %v90
    %108 = vmatpush.msra.mxu0 %v89
    %109 = vmatpush.msra.mxu0 %v88
    %110 = vmatpush.msra.mxu0 %v87
    %111 = vmatpush.msra.mxu0 %v86
    %112 = vmatpush.msra.mxu0 %v85
    %113 = vmatpush.msra.mxu0 %v84
    %114 = vmatpush.msra.mxu0 %v83
    %115 = vmatpush.msra.mxu0 %v82
    %116 = vmatpush.msra.mxu0 %v81
    %117 = vmatmul.f32.gmra.mxu0 %v80
    %v118 = vpop.f32.mrf.mxu0
    %v119 = vadd.f32 %v99, %v118
    %120 = vdwg.mxu0
    %v121 = vmax.f32 %v119, 0.0
    %v122 = vld [vmem:[#allocation4] sm:$0xff]
    %v123 = vld [vmem:[#allocation4 + $0x8] sm:$0xff]
    %v124 = vld [vmem:[#allocation4 + $0x10] sm:$0xff]
    %v125 = vld [vmem:[#allocation4 + $0x18] sm:$0xff]
    %v126 = vld [vmem:[#allocation4 + $0x20] sm:$0xff]
    %v127 = vld [vmem:[#allocation4 + $0x28] sm:$0xff]
    %v128 = vld [vmem:[#allocation4 + $0x30] sm:$0xff]
    %v129 = vld [vmem:[#allocation4 + $0x38] sm:$0xff]
    %v130 = vld [vmem:[#allocation4 + $0x40] sm:$0xff]
    %v131 = vld [vmem:[#allocation4 + $0x48] sm:$0xff]
    %v132 = vld [vmem:[#allocation4 + $0x50] sm:$0xff]
    %v133 = vld [vmem:[#allocation4 + $0x58] sm:$0xff]
    %v134 = vld [vmem:[#allocation4 + $0x60] sm:$0xff]
    %v135 = vld [vmem:[#allocation4 + $0x68] sm:$0xff]
    %v136 = vld [vmem:[#allocation4 + $0x70] sm:$0xff]
    %v137 = vld [vmem:[#allocation4 + $0x78] sm:$0xff]
    %v138 = vld [vmem:[%s6] sm:$0x1]
    %v140 = vperm.slane %v138, 0
    %142 = vmatpush.msra.mxu0 %v137
    %143 = vmatpush.msra.mxu0 %v136
    %144 = vmatpush.msra.mxu0 %v135
    %145 = vmatpush.msra.mxu0 %v134
    %146 = vmatpush.msra.mxu0 %v133
    %147 = vmatpush.msra.mxu0 %v132
    %148 = vmatpush.msra.mxu0 %v131
    %149 = vmatpush.msra.mxu0 %v130
    %150 = vmatpush.msra.mxu0 %v129
    %151 = vmatpush.msra.mxu0 %v128
    %152 = vmatpush.msra.mxu0 %v127
    %153 = vmatpush.msra.mxu0 %v126
    %154 = vmatpush.msra.mxu0 %v125
    %155 = vmatpush.msra.mxu0 %v124
    %156 = vmatpush.msra.mxu0 %v123
    %157 = vmatpush.msra.mxu0 %v122
    %158 = vmatmul.f32.gmra.mxu0 %v121
    %v159 = vpop.f32.mrf.mxu0
    %v160 = vadd.f32 %v140, %v159
    %161 = vdwg.mxu0
    %162 = vst [vmem:[%s7] sm:$0xff] %v160
    // Predicated region
    $region38: #{mlp_forward.1} parent=1 // pred_check
      _
    $region39: #{mlp_forward.1} parent=1 // pred_check_branch
      %164 = sbr.rel (0) target = $region41
    $region40: #{mlp_forward.1} parent=1 // pred_region
      _
    $region41: #{mlp_forward.1} parent=1 // pred_fallthru
      _
    // Predicated region
    $region42: #{mlp_forward.1} parent=1 // pred_check
      _
    $region43: #{mlp_forward.1} parent=1 // pred_check_branch
      %166 = sbr.rel (0) target = $region45
    $region44: #{mlp_forward.1} parent=1 // pred_region
      _
    $region45: #{mlp_forward.1} parent=1 // pred_fallthru
      _
    %167 = vsyncpa [#allocation3], 1
    %168 = vsyncpa [#allocation5], 1

</llo_original>
